<compile_context>
chip_gen: v7x
topology: tpu7x:2x2x1
jax: 0.10.0
libtpu: 0.0.40
codegen_flags: <defaults>
</compile_context>

<pallas_src>
import jax
import jax.numpy as jnp
from jax.experimental import pallas as pl
from jax.experimental.pallas import tpu as pltpu


# ----------------------------------------------------------------------------
# Kernel: one residual unit for one batch element, lane-dense (H, W*C) layout.
# ----------------------------------------------------------------------------
def _res_unit_kernel(x_ref, m1_ref, b1_ref, m2_ref, b2_ref, out_ref):
    """x_ref   : (1, H, W*C) f32   input slab (channels innermost on lanes)
       m1_ref  : (3*W*C, W*C) bf16 block-banded conv1 weights (dy-major rows)
       b1_ref  : (1, W*C)     f32  conv1 bias, tiled per pixel
       m2_ref  : (3*W*C, W*C) bf16 conv2 weights
       b2_ref  : (1, W*C)     f32  conv2 bias
       out_ref : (1, H, W*C)  f32  output slab
    """
    H = x_ref.shape[1]
    Wo = x_ref.shape[2]

    x = x_ref[0]                                        # (H, W*C) f32, lane-dense
    zrow = jnp.zeros((1, Wo), jnp.bfloat16)

    def conv3x3(act_f32, m_ref):
        # act_f32: (H, W*C), already relu'd (non-negative).
        # Height halo: pad with one zero row top/bottom at value level
        # (relu(pad(x)) == pad(relu(x)) since the pad is zeros).  The width
        # halo is already folded into the banded weight matrix.
        a = jnp.concatenate([zrow, act_f32.astype(jnp.bfloat16), zrow], axis=0)
        # Row-im2col: (H, 3*W*C), columns ordered (dy, px, ci) to match the
        # (3*W*C, W*C) weight rows.  Single MXU matmul, f32 accumulation.
        patches = jnp.concatenate([a[0:H], a[1:H + 1], a[2:H + 2]], axis=1)
        return jnp.dot(patches, m_ref[...], preferred_element_type=jnp.float32)

    y1 = conv3x3(jnp.maximum(x, 0.0), m1_ref) + b1_ref[...]     # (H, W*C) f32
    y2 = conv3x3(jnp.maximum(y1, 0.0), m2_ref) + b2_ref[...]    # (H, W*C) f32
    out_ref[0] = y2 + x                                         # residual add


# ----------------------------------------------------------------------------
# Wrapper-side weight preparation: fold 3x3 conv (dx taps + Cin) into a
# block-banded matrix so the kernel-side conv is a single lane-dense matmul.
# ----------------------------------------------------------------------------
def _banded_conv_weights(w, W):
    """w: (3, 3, Cin, Cout) -> (3*W*Cin, W*Cout), rows ordered (dy, rx, ci),
    cols ordered (px, co):  M[(dy, rx*Ci+ci), px*Co+co] = w[dy, rx-px+1, ci, co]
    for |rx - px| <= 1, else 0 (width halo handled by the zero band)."""
    _, _, Ci, Co = w.shape
    rx = jnp.arange(W)[:, None]
    px = jnp.arange(W)[None, :]
    dx = rx - px + 1                                    # tap index, valid in [0, 3)
    valid = (dx >= 0) & (dx <= 2)
    dxc = jnp.clip(dx, 0, 2)
    mats = []
    for dy in range(3):
        g = w[dy][dxc]                                  # (W, W, Ci, Co)
        g = jnp.where(valid[:, :, None, None], g, 0.0)
        g = jnp.transpose(g, (0, 2, 1, 3))              # (rx, ci, px, co)
        mats.append(g.reshape(W * Ci, W * Co))
    return jnp.concatenate(mats, axis=0)                # (3*W*Ci, W*Co)


def _prep_unit_params(w1, b1, w2, b2, W):
    C = w1.shape[3]
    # bf16 matmul operands (v6e/v7x MXU), f32 accumulation + f32 bias/residual.
    m1 = _banded_conv_weights(w1.astype(jnp.float32), W).astype(jnp.bfloat16)
    m2 = _banded_conv_weights(w2.astype(jnp.float32), W).astype(jnp.bfloat16)
    b1r = jnp.tile(b1.astype(jnp.float32), W).reshape(1, W * C)
    b2r = jnp.tile(b2.astype(jnp.float32), W).reshape(1, W * C)
    return m1, b1r, m2, b2r


def _residual_unit_flat(x_flat, m1, b1r, m2, b2r):
    """One residual unit on the lane-dense (N, H, W*C) layout."""
    N, H, Wo = x_flat.shape
    K = m1.shape[0]                                     # 3*W*C
    return pl.pallas_call(
        _res_unit_kernel,
        out_shape=jax.ShapeDtypeStruct((N, H, Wo), jnp.float32),
        grid_spec=pltpu.PrefetchScalarGridSpec(
            num_scalar_prefetch=0,
            grid=(N,),
            in_specs=[
                pl.BlockSpec((1, H, Wo), lambda n: (n, 0, 0)),   # input slab
                pl.BlockSpec((K, Wo), lambda n: (0, 0)),         # conv1 weights (resident)
                pl.BlockSpec((1, Wo), lambda n: (0, 0)),         # conv1 bias
                pl.BlockSpec((K, Wo), lambda n: (0, 0)),         # conv2 weights (resident)
                pl.BlockSpec((1, Wo), lambda n: (0, 0)),         # conv2 bias
            ],
            out_specs=pl.BlockSpec((1, H, Wo), lambda n: (n, 0, 0)),
        ),
        compiler_params=pltpu.CompilerParams(
            dimension_semantics=("parallel",),
            vmem_limit_bytes=32 * 1024 * 1024),
    )(x_flat, m1, b1r, m2, b2r)


def res_units_pallas(x_nchw, unit_params):
    """ResUnits forward. x_nchw: (N, C, H, W) f32 (PyTorch convention).
    unit_params: list of (w1, b1, w2, b2) with w*: (3,3,C,C), b*: (C,)."""
    N, C, H, W = x_nchw.shape
    # Single layout change for the whole stack: channels onto the lane axis.
    x_flat = jnp.transpose(x_nchw, (0, 2, 3, 1)).reshape(N, H, W * C)
    x_flat = x_flat.astype(jnp.float32)
    for (w1, b1, w2, b2) in unit_params:
        m1, b1r, m2, b2r = _prep_unit_params(w1, b1, w2, b2, W)
        x_flat = _residual_unit_flat(x_flat, m1, b1r, m2, b2r)
    return jnp.transpose(x_flat.reshape(N, H, W, C), (0, 3, 1, 2))


# ----------------------------------------------------------------------------
# Pure-JAX reference (f32 throughout), mirroring the PyTorch forward.
# ----------------------------------------------------------------------------
def _reference(x_nchw, unit_params):
    def conv(xh, w, b):
        y = jax.lax.conv_general_dilated(
            xh, w, window_strides=(1, 1), padding=((1, 1), (1, 1)),
            dimension_numbers=("NHWC", "HWIO", "NHWC"))
        return y + b

    xh = jnp.transpose(x_nchw, (0, 2, 3, 1))
    for (w1, b1, w2, b2) in unit_params:
        y = conv(jnp.maximum(xh, 0.0), w1, b1)
        y = conv(jnp.maximum(y, 0.0), w2, b2)
        xh = xh + y
    return jnp.transpose(xh, (0, 3, 1, 2))


if __name__ == "__main__":
    key = jax.random.PRNGKey(0)
    N, C, H, W = 2, 4, 16, 16       # batch, nb_filter, spatial
    REPS = 2                        # ResUnits(..., repetations=2)

    keys = jax.random.split(key, 1 + 4 * REPS)
    x = jax.random.normal(keys[0], (N, C, H, W), dtype=jnp.float32)

    # Deterministic init mimicking PyTorch Conv2d default (uniform +-1/sqrt(fan_in)).
    fan_in = C * 3 * 3
    bound = 1.0 / (fan_in ** 0.5)
    unit_params = []
    for r in range(REPS):
        kw1, kb1, kw2, kb2 = keys[1 + 4 * r: 5 + 4 * r]
        w1 = jax.random.uniform(kw1, (3, 3, C, C), jnp.float32, -bound, bound)
        b1 = jax.random.uniform(kb1, (C,), jnp.float32, -bound, bound)
        w2 = jax.random.uniform(kw2, (3, 3, C, C), jnp.float32, -bound, bound)
        b2 = jax.random.uniform(kb2, (C,), jnp.float32, -bound, bound)
        unit_params.append((w1, b1, w2, b2))

    out = jax.jit(res_units_pallas)(x, unit_params)
    out = jax.block_until_ready(out)

    ref = _reference(x, unit_params)
    assert out.shape == (N, C, H, W)
    # Matmul operands run in bf16 (f32 accumulation), so tolerance is bf16-level.
    err = float(jnp.max(jnp.abs(out - ref)))
    assert err < 5e-2, f"max abs error {err}"

    print("KERNEL_OK")
</pallas_src>

<mosaic_0001>
module attributes {stable_mosaic.version = 11 : i64} {
  func.func @_res_unit_kernel(%arg0: i32, %arg1: memref<1x16x64xf32, #tpu.memory_space<vmem>>, %arg2: memref<192x64xbf16, #tpu.memory_space<vmem>>, %arg3: memref<1x64xf32, #tpu.memory_space<vmem>>, %arg4: memref<192x64xbf16, #tpu.memory_space<vmem>>, %arg5: memref<1x64xf32, #tpu.memory_space<vmem>>, %arg6: memref<1x16x64xf32, #tpu.memory_space<vmem>>) attributes {dimension_semantics = [#tpu.dimension_semantics<parallel>], iteration_bounds = array<i64: 2>, scalar_prefetch = 0 : i64, scratch_operands = 0 : i64, tpu.core_type = #tpu.core_type<tc>, window_params = [{transform_indices = @transform_0, window_bounds = array<i64: 1, 16, 64>}, {pipeline_mode = #tpu.pipeline_mode<synchronous>, transform_indices = @transform_1, window_bounds = array<i64: 192, 64>}, {pipeline_mode = #tpu.pipeline_mode<synchronous>, transform_indices = @transform_2, window_bounds = array<i64: 1, 64>}, {pipeline_mode = #tpu.pipeline_mode<synchronous>, transform_indices = @transform_3, window_bounds = array<i64: 192, 64>}, {pipeline_mode = #tpu.pipeline_mode<synchronous>, transform_indices = @transform_4, window_bounds = array<i64: 1, 64>}, {transform_indices = @transform_5, window_bounds = array<i64: 1, 16, 64>}]} {
    %c0 = arith.constant 0 : index
    %c0_0 = arith.constant 0 : index
    %c0_1 = arith.constant 0 : index
    %0 = vector.load %arg1[%c0, %c0_0, %c0_1] : memref<1x16x64xf32, #tpu.memory_space<vmem>>, vector<1x16x64xf32>
    %1 = vector.shape_cast %0 : vector<1x16x64xf32> to vector<16x64xf32>
    %cst = arith.constant 0.000000e+00 : bf16
    %2 = vector.broadcast %cst : bf16 to vector<1x64xbf16>
    %cst_2 = arith.constant 0.000000e+00 : f32
    %3 = vector.broadcast %cst_2 : f32 to vector<16x64xf32>
    %4 = arith.maximumf %1, %3 : vector<16x64xf32>
    %5 = arith.truncf %4 : vector<16x64xf32> to vector<16x64xbf16>
    %6 = tpu.concatenate %2, %5, %2 in 0 : vector<1x64xbf16>, vector<16x64xbf16>, vector<1x64xbf16> -> vector<18x64xbf16>
    %7 = vector.extract_strided_slice %6 {offsets = [0, 0], sizes = [16, 64], strides = [1, 1]} : vector<18x64xbf16> to vector<16x64xbf16>
    %8 = vector.extract_strided_slice %6 {offsets = [1, 0], sizes = [16, 64], strides = [1, 1]} : vector<18x64xbf16> to vector<16x64xbf16>
    %9 = vector.extract_strided_slice %6 {offsets = [2, 0], sizes = [16, 64], strides = [1, 1]} : vector<18x64xbf16> to vector<16x64xbf16>
    %10 = tpu.concatenate %7, %8, %9 in 1 : vector<16x64xbf16>, vector<16x64xbf16>, vector<16x64xbf16> -> vector<16x192xbf16>
    %c0_3 = arith.constant 0 : index
    %c0_4 = arith.constant 0 : index
    %11 = vector.load %arg2[%c0_3, %c0_4] : memref<192x64xbf16, #tpu.memory_space<vmem>>, vector<192x64xbf16>
    %cst_5 = arith.constant dense<0.000000e+00> : vector<16x64xf32>
    %12 = tpu.matmul %10, %11, %cst_5 {dimension_numbers = #tpu.dot_dimension_numbers<[1], [0], [0], [1], [0, 0, 1, 1], [], []>} : vector<16x192xbf16>, vector<192x64xbf16>, vector<16x64xf32> -> vector<16x64xf32>
    %c0_6 = arith.constant 0 : index
    %c0_7 = arith.constant 0 : index
    %13 = vector.load %arg3[%c0_6, %c0_7] : memref<1x64xf32, #tpu.memory_space<vmem>>, vector<1x64xf32>
    %14 = vector.broadcast %13 : vector<1x64xf32> to vector<16x64xf32>
    %15 = arith.addf %12, %14 : vector<16x64xf32>
    %cst_8 = arith.constant 0.000000e+00 : f32
    %16 = vector.broadcast %cst_8 : f32 to vector<16x64xf32>
    %17 = arith.maximumf %15, %16 : vector<16x64xf32>
    %18 = arith.truncf %17 : vector<16x64xf32> to vector<16x64xbf16>
    %19 = tpu.concatenate %2, %18, %2 in 0 : vector<1x64xbf16>, vector<16x64xbf16>, vector<1x64xbf16> -> vector<18x64xbf16>
    %20 = vector.extract_strided_slice %19 {offsets = [0, 0], sizes = [16, 64], strides = [1, 1]} : vector<18x64xbf16> to vector<16x64xbf16>
    %21 = vector.extract_strided_slice %19 {offsets = [1, 0], sizes = [16, 64], strides = [1, 1]} : vector<18x64xbf16> to vector<16x64xbf16>
    %22 = vector.extract_strided_slice %19 {offsets = [2, 0], sizes = [16, 64], strides = [1, 1]} : vector<18x64xbf16> to vector<16x64xbf16>
    %23 = tpu.concatenate %20, %21, %22 in 1 : vector<16x64xbf16>, vector<16x64xbf16>, vector<16x64xbf16> -> vector<16x192xbf16>
    %c0_9 = arith.constant 0 : index
    %c0_10 = arith.constant 0 : index
    %24 = vector.load %arg4[%c0_9, %c0_10] : memref<192x64xbf16, #tpu.memory_space<vmem>>, vector<192x64xbf16>
    %cst_11 = arith.constant dense<0.000000e+00> : vector<16x64xf32>
    %25 = tpu.matmul %23, %24, %cst_11 {dimension_numbers = #tpu.dot_dimension_numbers<[1], [0], [0], [1], [0, 0, 1, 1], [], []>} : vector<16x192xbf16>, vector<192x64xbf16>, vector<16x64xf32> -> vector<16x64xf32>
    %c0_12 = arith.constant 0 : index
    %c0_13 = arith.constant 0 : index
    %26 = vector.load %arg5[%c0_12, %c0_13] : memref<1x64xf32, #tpu.memory_space<vmem>>, vector<1x64xf32>
    %27 = vector.broadcast %26 : vector<1x64xf32> to vector<16x64xf32>
    %28 = arith.addf %25, %27 : vector<16x64xf32>
    %29 = arith.addf %28, %1 : vector<16x64xf32>
    %c0_14 = arith.constant 0 : index
    %c0_15 = arith.constant 0 : index
    %c0_16 = arith.constant 0 : index
    %30 = vector.load %arg6[%c0_14, %c0_15, %c0_16] : memref<1x16x64xf32, #tpu.memory_space<vmem>>, vector<1x16x64xf32>
    %31 = vector.shape_cast %30 : vector<1x16x64xf32> to vector<16x64xf32>
    %32 = vector.shape_cast %29 : vector<16x64xf32> to vector<1x16x64xf32>
    tpu.vector_store %arg6[%c0_14, %c0_15, %c0_16], %32 {strides = array<i32>} : memref<1x16x64xf32, #tpu.memory_space<vmem>>, vector<1x16x64xf32>,
    return
  }
  func.func @transform_0(%arg0: i32) -> (i32, i32, i32) {
    %c0_i32 = arith.constant 0 : i32
    %c0_i32_0 = arith.constant 0 : i32
    %c0_i32_1 = arith.constant 0 : i32
    return %arg0, %c0_i32, %c0_i32_0 : i32, i32, i32
  }
  func.func @transform_1(%arg0: i32) -> (i32, i32) {
    %c0_i32 = arith.constant 0 : i32
    %c0_i32_0 = arith.constant 0 : i32
    %c0_i32_1 = arith.constant 0 : i32
    return %c0_i32, %c0_i32_0 : i32, i32
  }
  func.func @transform_2(%arg0: i32) -> (i32, i32) {
    %c0_i32 = arith.constant 0 : i32
    %c0_i32_0 = arith.constant 0 : i32
    %c0_i32_1 = arith.constant 0 : i32
    return %c0_i32, %c0_i32_0 : i32, i32
  }
  func.func @transform_3(%arg0: i32) -> (i32, i32) {
    %c0_i32 = arith.constant 0 : i32
    %c0_i32_0 = arith.constant 0 : i32
    %c0_i32_1 = arith.constant 0 : i32
    return %c0_i32, %c0_i32_0 : i32, i32
  }
  func.func @transform_4(%arg0: i32) -> (i32, i32) {
    %c0_i32 = arith.constant 0 : i32
    %c0_i32_0 = arith.constant 0 : i32
    %c0_i32_1 = arith.constant 0 : i32
    return %c0_i32, %c0_i32_0 : i32, i32
  }
  func.func @transform_5(%arg0: i32) -> (i32, i32, i32) {
    %c0_i32 = arith.constant 0 : i32
    %c0_i32_0 = arith.constant 0 : i32
    %c0_i32_1 = arith.constant 0 : i32
    return %arg0, %c0_i32, %c0_i32_0 : i32, i32, i32
  }
}

</mosaic_0001>

<llo_original>
// kernel: tile.23
$region0: #{tile.23}
  #allocation0 [shape = 's32[1]{0}', space=sflag, size = 0x4, scoped, tag = 'scoped memory for tile.23']
  %s0 = inlined_call_operand.vmem [shape: f32[4], index: 0, kind: input, shape index: {}]
  %s1 = inlined_call_operand.vmem [shape: f32[16,4], index: 1, kind: output, shape index: {}]
  // Predicated region
  $region2: #{tile.23} parent=0 // pred_check
    _
  $region3: #{tile.23} parent=0 // pred_check_branch
    %3 = sbr.rel (0) target = $region5
  $region4: #{tile.23} parent=0 // pred_region
    _
  $region5: #{tile.23} parent=0 // pred_fallthru
    _
  %v4 = vld [vmem:[%s0] ss:$0 sm:$0xff]
  %5 = vst [vmem:[%s1] sm:$0xff] %v4
  %s6 = scalar_lea.vmem %s1, 8
  %7 = vst [vmem:[%s6] sm:$0xff] %v4

// kernel: tile.24
$region0: #{tile.24}
  %s0 = inlined_call_operand.vmem [shape: f32[16,4], index: 0, kind: input, shape index: {}]
  %s1 = inlined_call_operand.vmem [shape: f32[1,64], index: 1, kind: output, shape index: {}]
  $region1: #{tile.24} parent=0
    #allocation0 [shape = 'u8[4096]{0}', space=vmem, size = 0x1000, scoped, tag = 'scoped mem for output reshape']
    %v2 = vld [vmem:[%s0] sm:$0x1]
    %vm3 = vcmask 31744
    %4 = vst.msk [vmem:[#allocation0] sm:$0x1] %vm3, %v2
    %s5 = scalar_lea.vmem %s0, 15
    %v6 = vld [vmem:[%s5] sm:$0x1]
    %7 = vrot.lane.b32.xlu0 %v6, 60
    %v8 = vpop.permute.xlu0 %7
    %vm9 = vcmask 523744
    %10 = vst.msk [vmem:[#allocation0] sm:$0x1] %vm9, %v8
    %s11 = scalar_lea.vmem %s0, 14
    %v12 = vld [vmem:[%s11] sm:$0x1]
    %13 = vrot.lane.b32.xlu0 %v12, 56
    %v14 = vpop.permute.xlu0 %13
    %vm15 = vcmask 490944
    %16 = vst.msk [vmem:[#allocation0] sm:$0x1] %vm15, %v14
    %s17 = scalar_lea.vmem %s0, 13
    %v18 = vld [vmem:[%s17] sm:$0x1]
    %19 = vrot.lane.b32.xlu0 %v18, 52
    %v20 = vpop.permute.xlu0 %19
    %vm21 = vcmask 458144
    %22 = vst.msk [vmem:[#allocation0] sm:$0x1] %vm21, %v20
    %s23 = scalar_lea.vmem %s0, 12
    %v24 = vld [vmem:[%s23] sm:$0x1]
    %25 = vrot.lane.b32.xlu0 %v24, 48
    %v26 = vpop.permute.xlu0 %25
    %vm27 = vcmask 425344
    %28 = vst.msk [vmem:[#allocation0] sm:$0x1] %vm27, %v26
    %s29 = scalar_lea.vmem %s0, 11
    %v30 = vld [vmem:[%s29] sm:$0x1]
    %31 = vrot.lane.b32.xlu0 %v30, 44
    %v32 = vpop.permute.xlu0 %31
    %vm33 = vcmask 392544
    %34 = vst.msk [vmem:[#allocation0] sm:$0x1] %vm33, %v32
    %s35 = scalar_lea.vmem %s0, 10
    %v36 = vld [vmem:[%s35] sm:$0x1]
    %37 = vrot.lane.b32.xlu0 %v36, 40
    %v38 = vpop.permute.xlu0 %37
    %vm39 = vcmask 359744
    %40 = vst.msk [vmem:[#allocation0] sm:$0x1] %vm39, %v38
    %s41 = scalar_lea.vmem %s0, 9
    %v42 = vld [vmem:[%s41] sm:$0x1]
    %43 = vrot.lane.b32.xlu0 %v42, 36
    %v44 = vpop.permute.xlu0 %43
    %vm45 = vcmask 326944
    %46 = vst.msk [vmem:[#allocation0] sm:$0x1] %vm45, %v44
    %s47 = scalar_lea.vmem %s0, 8
    %v48 = vld [vmem:[%s47] sm:$0x1]
    %49 = vrot.lane.b32.xlu0 %v48, 32
    %v50 = vpop.permute.xlu0 %49
    %vm51 = vcmask 294144
    %52 = vst.msk [vmem:[#allocation0] sm:$0x1] %vm51, %v50
    %s53 = scalar_lea.vmem %s0, 7
    %v54 = vld [vmem:[%s53] sm:$0x1]
    %55 = vrot.lane.b32.xlu0 %v54, 28
    %v56 = vpop.permute.xlu0 %55
    %vm57 = vcmask 261344
    %58 = vst.msk [vmem:[#allocation0] sm:$0x1] %vm57, %v56
    %s59 = scalar_lea.vmem %s0, 6
    %v60 = vld [vmem:[%s59] sm:$0x1]
    %61 = vrot.lane.b32.xlu0 %v60, 24
    %v62 = vpop.permute.xlu0 %61
    %vm63 = vcmask 228544
    %64 = vst.msk [vmem:[#allocation0] sm:$0x1] %vm63, %v62
    %s65 = scalar_lea.vmem %s0, 5
    %v66 = vld [vmem:[%s65] sm:$0x1]
    %67 = vrot.lane.b32.xlu0 %v66, 20
    %v68 = vpop.permute.xlu0 %67
    %vm69 = vcmask 195744
    %70 = vst.msk [vmem:[#allocation0] sm:$0x1] %vm69, %v68
    %s71 = scalar_lea.vmem %s0, 4
    %v72 = vld [vmem:[%s71] sm:$0x1]
    %73 = vrot.lane.b32.xlu0 %v72, 16
    %v74 = vpop.permute.xlu0 %73
    %vm75 = vcmask 162944
    %76 = vst.msk [vmem:[#allocation0] sm:$0x1] %vm75, %v74
    %s77 = scalar_lea.vmem %s0, 3
    %v78 = vld [vmem:[%s77] sm:$0x1]
    %79 = vrot.lane.b32.xlu0 %v78, 12
    %v80 = vpop.permute.xlu0 %79
    %vm81 = vcmask 130144
    %82 = vst.msk [vmem:[#allocation0] sm:$0x1] %vm81, %v80
    %s83 = scalar_lea.vmem %s0, 2
    %v84 = vld [vmem:[%s83] sm:$0x1]
    %85 = vrot.lane.b32.xlu0 %v84, 8
    %v86 = vpop.permute.xlu0 %85
    %vm87 = vcmask 97344
    %88 = vst.msk [vmem:[#allocation0] sm:$0x1] %vm87, %v86
    %s89 = scalar_lea.vmem %s0, 1
    %v90 = vld [vmem:[%s89] sm:$0x1]
    %91 = vrot.lane.b32.xlu0 %v90, 4
    %v92 = vpop.permute.xlu0 %91
    %vm93 = vcmask 64544
    %94 = vst.msk [vmem:[#allocation0] sm:$0x1] %vm93, %v92
    %s96 = sshllo.u32 0, 1
    %v98 = vld [vmem:[#allocation0] sm:%s96]
    %s99 = sshllo.u32 0, 1
    %100 = vst [vmem:[%s1] sm:%s99] %v98

// kernel: res_units_pallas.2
$region0: #{res_units_pallas.2}
  #allocation0 [shape = 'u32[]', space=smem, size = 0x4, offset = 0x4, fixed_abs, tag = 'smem constant byte address 0x4 - core index']
  #allocation1 [shape = 'u32[144,128]{1,0:T(1,128)}', space=vmem, size = 0x12000, scoped, tag = 'internal scratch']
  %s0 = inlined_call_operand.vmem [shape: f32[2,16,64], index: 0, kind: input, shape index: {}]
  %s1 = inlined_call_operand.vmem [shape: bf16[192,64], index: 1, kind: input, shape index: {}]
  %s2 = inlined_call_operand.vmem [shape: f32[1,64], index: 2, kind: input, shape index: {}]
  %s3 = inlined_call_operand.vmem [shape: bf16[192,64], index: 3, kind: input, shape index: {}]
  %s4 = inlined_call_operand.vmem [shape: f32[1,64], index: 4, kind: input, shape index: {}]
  %s5 = inlined_call_operand.vmem [shape: f32[2,16,64], index: 5, kind: output, shape index: {}]
  %s6 = sld [smem:[#allocation0]]
  $region53: #{res_units_pallas.2} parent=0
    _
  %s8 = ssub.s32 1, %s6
  %s9 = scalar_select 0, %s8, %s6
  loop: start=0, step=1, limit=4
  $region2: #{res_units_pallas.2} parent=0 // loop_pre_header
    _
  $region3: #{res_units_pallas.2} parent=0 // loop_header
    %s11 = sphi 0, %s15
    %p12 = scmp.ge.s32.totalorder %s11, 4
    %s21 = sphi 0, %s23
    %s24 = sphi 0, %s21
    %s25 = sphi 0, %s24
    %s41 = sphi 0, %s25
    %s45 = sphi 0, %s45
    %s47 = sphi 0, %s45
    %s48 = sphi 0, %s47
    %s62 = sphi 0, %s48
    %s66 = sphi 0, %s66
    %s68 = sphi 0, %s66
    %s69 = sphi 0, %s68
    %s83 = sphi 0, %s69
    %s87 = sphi 0, %s87
    %s89 = sphi 0, %s87
    %s90 = sphi 0, %s89
    %s104 = sphi 0, %s90
    %s108 = sphi 0, %s108
    %s110 = sphi 0, %s108
    %s111 = sphi 0, %s110
    %s125 = sphi 0, %s111
    %s131 = sphi 0, %s133
    %s134 = sphi 0, %s131
    %s135 = sphi 0, %s134
    %s151 = sphi 0, %s135
  $region4: #{res_units_pallas.2} parent=0 // loop_header_branch
    %14 = sbr.rel (%p12) target = $region8
  $region5: #{res_units_pallas.2} parent=0 // loop_body
    %s16 = ssub.s32 %s11, 1
    %s17 = ssub.s32 %s11, 2
    %s18 = sadd.s32 %s11, 1
    %s19 = ssub.s32 %s11, %s18
    %p20 = scmp.eq.s32.totalorder %s19, 0
    %s22 = sadd.s32 %s21, 1
    %s23 = scalar_select %p20, %s21, %s22
    %p26 = pneg %p20
    %p27 = scmp.eq.s32.totalorder %s11, 1
    %p28 = por %p26, %p27
    %p29 = scmp.ne.s32.totalorder %s21, %s24
    %p30 = scmp.eq.s32.totalorder %s11, 0
    %p31 = por %p29, %p30
    %p32 = scmp.ne.s32.totalorder %s21, %s24
    %p33 = scmp.eq.s32.totalorder %s16, 1
    %p34 = por %p32, %p33
    %p35 = scmp.ne.s32.totalorder %s24, %s25
    %p36 = scmp.eq.s32.totalorder %s16, 0
    %p37 = por %p35, %p36
    %p38 = scmp.ne.s32.totalorder %s24, %s25
    %p39 = scmp.eq.s32.totalorder %s17, 1
    %p40 = por %p38, %p39
    %p42 = scmp.ne.s32.totalorder %s25, %s41
    %p43 = scmp.eq.s32.totalorder %s17, 0
    %p44 = por %p42, %p43
    %s46 = sadd.s32 %s45, 1
    %p49 = scmp.eq.s32.totalorder %s11, 1
    %p50 = scmp.ne.s32.totalorder %s45, %s47
    %p51 = scmp.eq.s32.totalorder %s11, 0
    %p52 = por %p50, %p51
    %p53 = scmp.ne.s32.totalorder %s45, %s47
    %p54 = scmp.eq.s32.totalorder %s16, 1
    %p55 = por %p53, %p54
    %p56 = scmp.ne.s32.totalorder %s47, %s48
    %p57 = scmp.eq.s32.totalorder %s16, 0
    %p58 = por %p56, %p57
    %p59 = scmp.ne.s32.totalorder %s47, %s48
    %p60 = scmp.eq.s32.totalorder %s17, 1
    %p61 = por %p59, %p60
    %p63 = scmp.ne.s32.totalorder %s48, %s62
    %p64 = scmp.eq.s32.totalorder %s17, 0
    %p65 = por %p63, %p64
    %s67 = sadd.s32 %s66, 1
    %p70 = scmp.eq.s32.totalorder %s11, 1
    %p71 = scmp.ne.s32.totalorder %s66, %s68
    %p72 = scmp.eq.s32.totalorder %s11, 0
    %p73 = por %p71, %p72
    %p74 = scmp.ne.s32.totalorder %s66, %s68
    %p75 = scmp.eq.s32.totalorder %s16, 1
    %p76 = por %p74, %p75
    %p77 = scmp.ne.s32.totalorder %s68, %s69
    %p78 = scmp.eq.s32.totalorder %s16, 0
    %p79 = por %p77, %p78
    %p80 = scmp.ne.s32.totalorder %s68, %s69
    %p81 = scmp.eq.s32.totalorder %s17, 1
    %p82 = por %p80, %p81
    %p84 = scmp.ne.s32.totalorder %s69, %s83
    %p85 = scmp.eq.s32.totalorder %s17, 0
    %p86 = por %p84, %p85
    %s88 = sadd.s32 %s87, 1
    %p91 = scmp.eq.s32.totalorder %s11, 1
    %p92 = scmp.ne.s32.totalorder %s87, %s89
    %p93 = scmp.eq.s32.totalorder %s11, 0
    %p94 = por %p92, %p93
    %p95 = scmp.ne.s32.totalorder %s87, %s89
    %p96 = scmp.eq.s32.totalorder %s16, 1
    %p97 = por %p95, %p96
    %p98 = scmp.ne.s32.totalorder %s89, %s90
    %p99 = scmp.eq.s32.totalorder %s16, 0
    %p100 = por %p98, %p99
    %p101 = scmp.ne.s32.totalorder %s89, %s90
    %p102 = scmp.eq.s32.totalorder %s17, 1
    %p103 = por %p101, %p102
    %p105 = scmp.ne.s32.totalorder %s90, %s104
    %p106 = scmp.eq.s32.totalorder %s17, 0
    %p107 = por %p105, %p106
    %s109 = sadd.s32 %s108, 1
    %p112 = scmp.eq.s32.totalorder %s11, 1
    %p113 = scmp.ne.s32.totalorder %s108, %s110
    %p114 = scmp.eq.s32.totalorder %s11, 0
    %p115 = por %p113, %p114
    %p116 = scmp.ne.s32.totalorder %s108, %s110
    %p117 = scmp.eq.s32.totalorder %s16, 1
    %p118 = por %p116, %p117
    %p119 = scmp.ne.s32.totalorder %s110, %s111
    %p120 = scmp.eq.s32.totalorder %s16, 0
    %p121 = por %p119, %p120
    %p122 = scmp.ne.s32.totalorder %s110, %s111
    %p123 = scmp.eq.s32.totalorder %s17, 1
    %p124 = por %p122, %p123
    %p126 = scmp.ne.s32.totalorder %s111, %s125
    %p127 = scmp.eq.s32.totalorder %s17, 0
    %p128 = por %p126, %p127
    %s129 = ssub.s32 %s11, %s18
    %p130 = scmp.eq.s32.totalorder %s129, 0
    %s132 = sadd.s32 %s131, 1
    %s133 = scalar_select %p130, %s131, %s132
    %p136 = pneg %p130
    %p137 = scmp.eq.s32.totalorder %s11, 1
    %p138 = por %p136, %p137
    %p139 = scmp.ne.s32.totalorder %s131, %s134
    %p140 = scmp.eq.s32.totalorder %s11, 0
    %p141 = por %p139, %p140
    %p142 = scmp.ne.s32.totalorder %s131, %s134
    %p143 = scmp.eq.s32.totalorder %s16, 1
    %p144 = por %p142, %p143
    %p145 = scmp.ne.s32.totalorder %s134, %s135
    %p146 = scmp.eq.s32.totalorder %s16, 0
    %p147 = por %p145, %p146
    %p148 = scmp.ne.s32.totalorder %s134, %s135
    %p149 = scmp.eq.s32.totalorder %s17, 1
    %p150 = por %p148, %p149
    %p152 = scmp.ne.s32.totalorder %s135, %s151
    %p153 = scmp.eq.s32.totalorder %s17, 0
    %p154 = por %p152, %p153
    %p155 = scmp.le.s32.totalorder 1, %s11
    %p156 = scmp.lt.s32.totalorder %s11, 3
    %p157 = pnand %p155, %p156
    %p158 = pneg %p157
    // Predicated region
    $region9: #{res_units_pallas.2} parent=5 // pred_check
      _
    $region10: #{res_units_pallas.2} parent=5 // pred_check_branch
      %160 = sbr.rel (%p157) target = $region12
    $region11: #{res_units_pallas.2} parent=5 // pred_region
      %s161 = ssub.s32 %s11, 1
      // Predicated region
      $region13: #{res_units_pallas.2} parent=11 // pred_check
        %p162 = pneg %p58
      $region14: #{res_units_pallas.2} parent=11 // pred_check_branch
        %164 = sbr.rel (%p162) target = $region16
      $region15: #{res_units_pallas.2} parent=11 // pred_region
        _
      $region16: #{res_units_pallas.2} parent=11 // pred_fallthru
        _
      // Predicated region
      $region17: #{res_units_pallas.2} parent=11 // pred_check
        %p165 = pneg %p79
      $region18: #{res_units_pallas.2} parent=11 // pred_check_branch
        %167 = sbr.rel (%p165) target = $region20
      $region19: #{res_units_pallas.2} parent=11 // pred_region
        _
      $region20: #{res_units_pallas.2} parent=11 // pred_fallthru
        _
      // Predicated region
      $region21: #{res_units_pallas.2} parent=11 // pred_check
        %p168 = pneg %p100
      $region22: #{res_units_pallas.2} parent=11 // pred_check_branch
        %170 = sbr.rel (%p168) target = $region24
      $region23: #{res_units_pallas.2} parent=11 // pred_region
        _
      $region24: #{res_units_pallas.2} parent=11 // pred_fallthru
        _
      // Predicated region
      $region25: #{res_units_pallas.2} parent=11 // pred_check
        %p171 = pneg %p121
      $region26: #{res_units_pallas.2} parent=11 // pred_check_branch
        %173 = sbr.rel (%p171) target = $region28
      $region27: #{res_units_pallas.2} parent=11 // pred_region
        _
      $region28: #{res_units_pallas.2} parent=11 // pred_fallthru
        _
    $region12: #{res_units_pallas.2} parent=5 // pred_fallthru
      _
    %p174 = scmp.lt.s32.totalorder %s11, 2
    // Predicated region
    $region29: #{res_units_pallas.2} parent=5 // pred_check
      %p175 = pneg %p174
    $region30: #{res_units_pallas.2} parent=5 // pred_check_branch
      %177 = sbr.rel (%p175) target = $region32
    $region31: #{res_units_pallas.2} parent=5 // pred_region
      // Predicated region
      $region33: #{res_units_pallas.2} parent=31 // pred_check
        %p178 = pneg %p31
      $region34: #{res_units_pallas.2} parent=31 // pred_check_branch
        %180 = sbr.rel (%p178) target = $region36
      $region35: #{res_units_pallas.2} parent=31 // pred_region
        %p181 = scmp.lt.s32.totalorder %s11, 1
        %s182 = scalar_select %p181, %s11, 1
        %s183 = smul.addr %s182, 2
        %s184 = smul.addr %s183, 8
        %s185 = scalar_lea.vmem %s0, %s184
      $region36: #{res_units_pallas.2} parent=31 // pred_fallthru
        _
    $region32: #{res_units_pallas.2} parent=5 // pred_fallthru
      _
    %p186 = scmp.le.s32.totalorder 1, %s11
    %p187 = scmp.lt.s32.totalorder %s11, 3
    %p188 = pnand %p186, %p187
    %p189 = pneg %p188
    // Predicated region
    $region37: #{res_units_pallas.2} parent=5 // pred_check
      _
    $region38: #{res_units_pallas.2} parent=5 // pred_check_branch
      %191 = sbr.rel (%p188) target = $region40
    $region39: #{res_units_pallas.2} parent=5 // pred_region
      %s192 = ssub.s32 %s11, 1
      %p193 = scmp.lt.s32.totalorder %s16, 1
      %s194 = scalar_select %p193, %s16, 1
      %s195 = smul.addr %s194, 2
      %s196 = smul.addr %s195, 8
      %s197 = scalar_lea.vmem %s0, %s196
      %p198 = pneg %p37
      %p199 = pneg %p34
      %p200 = pneg %p58
      %p201 = pneg %p55
      %p202 = pneg %p79
      %p203 = pneg %p76
      %p204 = pneg %p100
      %p205 = pneg %p97
      %p206 = pneg %p121
      %p207 = pneg %p118
      %p208 = pneg %p147
      %p209 = pneg %p144
      %p210 = scmp.lt.s32.totalorder %s16, 1
      %s211 = scalar_select %p210, %s16, 1
      %s212 = smul.addr %s211, 2
      %s213 = smul.addr %s212, 8
      %s214 = scalar_lea.vmem %s5, %s213
      %p215 = scmp.lt.s32.totalorder %s16, 1
      %s216 = scalar_select %p215, %s16, 1
      %s217 = smul.addr %s216, 2
      %s218 = smul.addr %s217, 8
      %s219 = scalar_lea.vmem %s0, %s218
      %p220 = scmp.lt.s32.totalorder %s16, 1
      %s221 = scalar_select %p220, %s16, 1
      %s222 = smul.addr %s221, 2
      %s223 = smul.addr %s222, 8
      %s224 = scalar_lea.vmem %s5, %s223
      %v226 = vld [vmem:[%s219] sm:$0xff]
      %v227 = vld [vmem:[%s219 + $0x8] sm:$0xff]
      %v228 = vmax.f32 %v226, 0.0
      %v229 = vmax.f32 %v227, 0.0
      %v230 = vpack.c.bf16 %v229, %v228
      %v232 = vshrl.u32 %v230, 16
      %v234 = vrot.slane %v232, 7
      %v235 = vshll.u32 %v230, 16
      %v237 = vor.u32 %v234, %v235
      %vm240 = vcmask 1040384
      %vm241 = vsmask.f32 256
      %vm242 = vmand %vm240, %vm241
      %v243 = vsel %vm242, 0, %v237
      %v244 = vsel %vm242, %v234, 0
      %vm245 = vsmask.f32 7424
      %v247 = vshrl.u32 %v243, 16
      %v249 = vshll.u32 %v243, 16
      %v251 = vrot.slane %v249, 1
      %v252 = vor.u32 %v247, %v251
      %v254 = vshll.u32 %v244, 16
      %v256 = vrot.slane %v254, 1
      %v257 = vsel %vm245, %v252, %v256
      %258 = vrot.lane.b32.xlu0 %v257, 64
      %v259 = vpop.permute.xlu0 %258
      %vm262 = vcmask 1046528
      %v263 = vrot.slane %v243, 1
      %v264 = vrot.slane %v244, 1
      %v265 = vsel %vm262, %v263, %v264
      %vm266 = vcmask 523264
      %v268 = vsel %vm266, %v243, %v259
      %v270 = vld [vmem:[%s1] sm:$0xf]
      %v271 = vld [vmem:[%s1 + $0x4] sm:$0xf]
      %v272 = vld [vmem:[%s1 + $0x8] sm:$0xf]
      %v273 = vld [vmem:[%s1 + $0xc] sm:$0xf]
      %v274 = vld [vmem:[%s1 + $0x10] sm:$0xf]
      %v275 = vld [vmem:[%s1 + $0x14] sm:$0xf]
      %v276 = vld [vmem:[%s1 + $0x18] sm:$0xf]
      %v277 = vld [vmem:[%s1 + $0x1c] sm:$0xf]
      %v278 = vld [vmem:[%s1 + $0x20] sm:$0xf]
      %v279 = vld [vmem:[%s1 + $0x24] sm:$0xf]
      %v280 = vld [vmem:[%s1 + $0x28] sm:$0xf]
      %v281 = vld [vmem:[%s1 + $0x2c] sm:$0xf]
      %v282 = vld [vmem:[%s1 + $0x30] sm:$0xf]
      %v283 = vld [vmem:[%s1 + $0x34] sm:$0xf]
      %v284 = vld [vmem:[%s1 + $0x38] sm:$0xf]
      %v285 = vld [vmem:[%s1 + $0x3c] sm:$0xf]
      %v286 = vld [vmem:[%s1 + $0x40] sm:$0xf]
      %v287 = vld [vmem:[%s1 + $0x44] sm:$0xf]
      %v288 = vld [vmem:[%s1 + $0x48] sm:$0xf]
      %v289 = vld [vmem:[%s1 + $0x4c] sm:$0xf]
      %v290 = vld [vmem:[%s1 + $0x50] sm:$0xf]
      %v291 = vld [vmem:[%s1 + $0x54] sm:$0xf]
      %v292 = vld [vmem:[%s1 + $0x58] sm:$0xf]
      %v293 = vld [vmem:[%s1 + $0x5c] sm:$0xf]
      %v294 = vld [vmem:[%s2] sm:$0x1]
      %v296 = vlaneseq
      %v297 = vshrl.u32 %v296, 7
      %v298 = vsub.s32 0, %v297
      %v299 = vrot.slane %v294, %v298
      %v325 = vunpack.c.l.b16 %v270
      %v326 = vunpack.c.l.b16 %v271
      %v327 = vunpack.c.l.b16 %v272
      %v328 = vunpack.c.l.b16 %v273
      %v329 = vunpack.c.l.b16 %v274
      %v330 = vunpack.c.l.b16 %v275
      %v331 = vunpack.c.l.b16 %v276
      %v332 = vunpack.c.l.b16 %v277
      %v333 = vunpack.c.l.b16 %v278
      %v334 = vunpack.c.l.b16 %v279
      %v335 = vunpack.c.l.b16 %v280
      %v336 = vunpack.c.l.b16 %v281
      %v337 = vunpack.c.l.b16 %v282
      %v338 = vunpack.c.l.b16 %v283
      %v339 = vunpack.c.l.b16 %v284
      %v340 = vunpack.c.l.b16 %v285
      %v341 = vunpack.c.l.b16 %v286
      %v342 = vunpack.c.l.b16 %v287
      %v343 = vunpack.c.l.b16 %v288
      %v344 = vunpack.c.l.b16 %v289
      %v345 = vunpack.c.l.b16 %v290
      %v346 = vunpack.c.l.b16 %v291
      %v347 = vunpack.c.l.b16 %v292
      %v348 = vunpack.c.l.b16 %v293
      %v349 = vpack.c.b16 %v326, %v325
      %v350 = vpack.c.b16 %v328, %v327
      %v351 = vpack.c.b16 %v330, %v329
      %v352 = vpack.c.b16 %v332, %v331
      %v353 = vpack.c.b16 %v334, %v333
      %v354 = vpack.c.b16 %v336, %v335
      %v355 = vpack.c.b16 %v338, %v337
      %v356 = vpack.c.b16 %v340, %v339
      %v357 = vpack.c.b16 %v342, %v341
      %v358 = vpack.c.b16 %v344, %v343
      %v359 = vpack.c.b16 %v346, %v345
      %v360 = vpack.c.b16 %v348, %v347
      %v374 = vsel %vm266, %v265, 0
      %376 = vmatprep.subr.bf16.mxu0 0
      %377 = vmatpush1.bf16.msra.mxu0 %v349
      %378 = vmatprep.subr.bf16.mxu0 0
      %379 = vmatpush1.bf16.msra.mxu0 %v350
      %380 = vmatprep.subr.bf16.mxu0 0
      %381 = vmatpush1.bf16.msra.mxu0 %v351
      %382 = vmatprep.subr.bf16.mxu0 0
      %383 = vmatpush1.bf16.msra.mxu0 %v352
      %384 = vmatprep.subr.bf16.mxu0 0
      %385 = vmatpush1.bf16.msra.mxu0 %v353
      %386 = vmatprep.subr.bf16.mxu0 0
      %387 = vmatpush1.bf16.msra.mxu0 %v354
      %388 = vmatprep.subr.bf16.mxu0 0
      %389 = vmatpush1.bf16.msra.mxu0 %v355
      %390 = vmatprep.subr.bf16.mxu0 0
      %391 = vmatpush1.bf16.msra.mxu0 %v356
      %392 = vmatprep.subr.bf16.mxu0 0
      %393 = vmatpush1.bf16.msra.mxu0 %v357
      %394 = vmatprep.subr.bf16.mxu0 0
      %395 = vmatpush1.bf16.msra.mxu0 %v358
      %396 = vmatprep.subr.bf16.mxu0 0
      %397 = vmatpush1.bf16.msra.mxu0 %v359
      %398 = vmatprep.subr.bf16.mxu0 0
      %399 = vmatpush1.bf16.msra.mxu0 %v360
      %400 = vmatprep.subr.bf16.mxu0 0
      %401 = vmatpush1.bf16.msra.mxu0 0
      %402 = vmatprep.subr.bf16.mxu0 0
      %403 = vmatpush1.bf16.msra.mxu0 0
      %404 = vmatprep.subr.bf16.mxu0 0
      %405 = vmatpush1.bf16.msra.mxu0 0
      %406 = vmatprep.subr.bf16.mxu0 0
      %407 = vmatpush1.bf16.msra.mxu0 0
      %408 = vmatprep.mubr.bf16.mxu0 %v374
      %409 = vmatmul.mubr.bf16.gmra.mrb[0].mxu0 %v268
      %v410 = vpop.f32.mrb[0].mxu0
      %v411 = vadd.f32 %v299, %v410
      %v412 = vpop.f32.mrb[0].mxu0
      %v413 = vpop.f32.mrb[0].mxu0
      %v414 = vadd.f32 %v299, %v413
      %v415 = vpop.f32.mrb[0].mxu0
      %416 = vdwg.mxu0
      %v417 = vmax.f32 %v411, 0.0
      %v418 = vmax.f32 %v414, 0.0
      %v419 = vpack.c.bf16 %v418, %v417
      %v421 = vshrl.u32 %v419, 16
      %v423 = vrot.slane %v421, 7
      %v424 = vshll.u32 %v419, 16
      %v426 = vor.u32 %v423, %v424
      %v429 = vsel %vm242, 0, %v426
      %v430 = vsel %vm242, %v423, 0
      %v432 = vshrl.u32 %v429, 16
      %v434 = vshll.u32 %v429, 16
      %v436 = vrot.slane %v434, 1
      %v437 = vor.u32 %v432, %v436
      %v439 = vshll.u32 %v430, 16
      %v441 = vrot.slane %v439, 1
      %v442 = vsel %vm245, %v437, %v441
      %443 = vrot.lane.b32.xlu0 %v442, 64
      %v444 = vpop.permute.xlu0 %443
      %v447 = vrot.slane %v429, 1
      %v448 = vrot.slane %v430, 1
      %v449 = vsel %vm262, %v447, %v448
      %v451 = vsel %vm266, %v429, %v444
      %v453 = vld [vmem:[%s3] sm:$0xf]
      %v454 = vld [vmem:[%s3 + $0x4] sm:$0xf]
      %v455 = vld [vmem:[%s3 + $0x8] sm:$0xf]
      %v456 = vld [vmem:[%s3 + $0xc] sm:$0xf]
      %v457 = vld [vmem:[%s3 + $0x10] sm:$0xf]
      %v458 = vld [vmem:[%s3 + $0x14] sm:$0xf]
      %v459 = vld [vmem:[%s3 + $0x18] sm:$0xf]
      %v460 = vld [vmem:[%s3 + $0x1c] sm:$0xf]
      %v461 = vld [vmem:[%s3 + $0x20] sm:$0xf]
      %v462 = vld [vmem:[%s3 + $0x24] sm:$0xf]
      %v463 = vld [vmem:[%s3 + $0x28] sm:$0xf]
      %v464 = vld [vmem:[%s3 + $0x2c] sm:$0xf]
      %v465 = vld [vmem:[%s3 + $0x30] sm:$0xf]
      %v466 = vld [vmem:[%s3 + $0x34] sm:$0xf]
      %v467 = vld [vmem:[%s3 + $0x38] sm:$0xf]
      %v468 = vld [vmem:[%s3 + $0x3c] sm:$0xf]
      %v469 = vld [vmem:[%s3 + $0x40] sm:$0xf]
      %v470 = vld [vmem:[%s3 + $0x44] sm:$0xf]
      %v471 = vld [vmem:[%s3 + $0x48] sm:$0xf]
      %v472 = vld [vmem:[%s3 + $0x4c] sm:$0xf]
      %v473 = vld [vmem:[%s3 + $0x50] sm:$0xf]
      %v474 = vld [vmem:[%s3 + $0x54] sm:$0xf]
      %v475 = vld [vmem:[%s3 + $0x58] sm:$0xf]
      %v476 = vld [vmem:[%s3 + $0x5c] sm:$0xf]
      %v477 = vld [vmem:[%s4] sm:$0x1]
      %v479 = vlaneseq
      %v480 = vshrl.u32 %v479, 7
      %v481 = vsub.s32 0, %v480
      %v482 = vrot.slane %v477, %v481
      %v508 = vunpack.c.l.b16 %v453
      %v509 = vunpack.c.l.b16 %v454
      %v510 = vunpack.c.l.b16 %v455
      %v511 = vunpack.c.l.b16 %v456
      %v512 = vunpack.c.l.b16 %v457
      %v513 = vunpack.c.l.b16 %v458
      %v514 = vunpack.c.l.b16 %v459
      %v515 = vunpack.c.l.b16 %v460
      %v516 = vunpack.c.l.b16 %v461
      %v517 = vunpack.c.l.b16 %v462
      %v518 = vunpack.c.l.b16 %v463
      %v519 = vunpack.c.l.b16 %v464
      %v520 = vunpack.c.l.b16 %v465
      %v521 = vunpack.c.l.b16 %v466
      %v522 = vunpack.c.l.b16 %v467
      %v523 = vunpack.c.l.b16 %v468
      %v524 = vunpack.c.l.b16 %v469
      %v525 = vunpack.c.l.b16 %v470
      %v526 = vunpack.c.l.b16 %v471
      %v527 = vunpack.c.l.b16 %v472
      %v528 = vunpack.c.l.b16 %v473
      %v529 = vunpack.c.l.b16 %v474
      %v530 = vunpack.c.l.b16 %v475
      %v531 = vunpack.c.l.b16 %v476
      %v532 = vpack.c.b16 %v509, %v508
      %v533 = vpack.c.b16 %v511, %v510
      %v534 = vpack.c.b16 %v513, %v512
      %v535 = vpack.c.b16 %v515, %v514
      %v536 = vpack.c.b16 %v517, %v516
      %v537 = vpack.c.b16 %v519, %v518
      %v538 = vpack.c.b16 %v521, %v520
      %v539 = vpack.c.b16 %v523, %v522
      %v540 = vpack.c.b16 %v525, %v524
      %v541 = vpack.c.b16 %v527, %v526
      %v542 = vpack.c.b16 %v529, %v528
      %v543 = vpack.c.b16 %v531, %v530
      %v557 = vsel %vm266, %v449, 0
      %559 = vmatprep.subr.bf16.mxu0 0
      %560 = vmatpush1.bf16.msra.mxu0 %v532
      %561 = vmatprep.subr.bf16.mxu0 0
      %562 = vmatpush1.bf16.msra.mxu0 %v533
      %563 = vmatprep.subr.bf16.mxu0 0
      %564 = vmatpush1.bf16.msra.mxu0 %v534
      %565 = vmatprep.subr.bf16.mxu0 0
      %566 = vmatpush1.bf16.msra.mxu0 %v535
      %567 = vmatprep.subr.bf16.mxu0 0
      %568 = vmatpush1.bf16.msra.mxu0 %v536
      %569 = vmatprep.subr.bf16.mxu0 0
      %570 = vmatpush1.bf16.msra.mxu0 %v537
      %571 = vmatprep.subr.bf16.mxu0 0
      %572 = vmatpush1.bf16.msra.mxu0 %v538
      %573 = vmatprep.subr.bf16.mxu0 0
      %574 = vmatpush1.bf16.msra.mxu0 %v539
      %575 = vmatprep.subr.bf16.mxu0 0
      %576 = vmatpush1.bf16.msra.mxu0 %v540
      %577 = vmatprep.subr.bf16.mxu0 0
      %578 = vmatpush1.bf16.msra.mxu0 %v541
      %579 = vmatprep.subr.bf16.mxu0 0
      %580 = vmatpush1.bf16.msra.mxu0 %v542
      %581 = vmatprep.subr.bf16.mxu0 0
      %582 = vmatpush1.bf16.msra.mxu0 %v543
      %583 = vmatprep.subr.bf16.mxu0 0
      %584 = vmatpush1.bf16.msra.mxu0 0
      %585 = vmatprep.subr.bf16.mxu0 0
      %586 = vmatpush1.bf16.msra.mxu0 0
      %587 = vmatprep.subr.bf16.mxu0 0
      %588 = vmatpush1.bf16.msra.mxu0 0
      %589 = vmatprep.subr.bf16.mxu0 0
      %590 = vmatpush1.bf16.msra.mxu0 0
      %591 = vmatprep.mubr.bf16.mxu0 %v557
      %592 = vmatmul.mubr.bf16.gmra.mrb[0].mxu0 %v451
      %v593 = vpop.f32.mrb[0].mxu0
      %v594 = vadd.f32 %v482, %v593
      %v595 = vpop.f32.mrb[0].mxu0
      %v596 = vpop.f32.mrb[0].mxu0
      %v597 = vadd.f32 %v482, %v596
      %v598 = vpop.f32.mrb[0].mxu0
      %599 = vdwg.mxu0
      %v600 = vadd.f32 %v594, %v226
      %v601 = vadd.f32 %v597, %v227
      %602 = vst.msk [vmem:[%s224] sm:$0xff] %vm266, %v600
      %603 = vst.msk [vmem:[%s224 + $0x8] sm:$0xff] %vm266, %v601
      %p604 = scmp.lt.s32.totalorder %s16, 1
      %s605 = scalar_select %p604, %s16, 1
      %s606 = smul.addr %s605, 2
      %s607 = smul.addr %s606, 8
      %s608 = scalar_lea.vmem %s5, %s607
      // Predicated region
      $region41: #{res_units_pallas.2} parent=39 // pred_check
        %p609 = pneg %p144
      $region42: #{res_units_pallas.2} parent=39 // pred_check_branch
        %611 = sbr.rel (%p609) target = $region44
      $region43: #{res_units_pallas.2} parent=39 // pred_region
        _
      $region44: #{res_units_pallas.2} parent=39 // pred_fallthru
        _
    $region40: #{res_units_pallas.2} parent=5 // pred_fallthru
      _
    %p612 = scmp.le.s32.totalorder 2, %s11
    // Predicated region
    $region45: #{res_units_pallas.2} parent=5 // pred_check
      %p613 = pneg %p612
    $region46: #{res_units_pallas.2} parent=5 // pred_check_branch
      %615 = sbr.rel (%p613) target = $region48
    $region47: #{res_units_pallas.2} parent=5 // pred_region
      %s616 = ssub.s32 %s11, 2
      // Predicated region
      $region49: #{res_units_pallas.2} parent=47 // pred_check
        %p617 = pneg %p150
      $region50: #{res_units_pallas.2} parent=47 // pred_check_branch
        %619 = sbr.rel (%p617) target = $region52
      $region51: #{res_units_pallas.2} parent=47 // pred_region
        %p620 = scmp.lt.s32.totalorder %s17, 1
        %s621 = scalar_select %p620, %s17, 1
        %s622 = smul.addr %s621, 2
        %s623 = smul.addr %s622, 8
        %s624 = scalar_lea.vmem %s5, %s623
      $region52: #{res_units_pallas.2} parent=47 // pred_fallthru
        _
    $region48: #{res_units_pallas.2} parent=5 // pred_fallthru
      _
  $region6: #{res_units_pallas.2} parent=0 // loop_footer
    %s15 = sadd.s32 1, %s11
  $region7: #{res_units_pallas.2} parent=0 // loop_footer_branch
    %10 = sbr.rel target = $region3
  $region8: #{res_units_pallas.2} parent=0 // loop_exit
    _

</llo_original>
